<compile_context>
chip_gen: v7x
topology: tpu7x:2x2x1
jax: 0.10.0
libtpu: 0.0.40
codegen_flags: <defaults>
</compile_context>

<pallas_src>
import functools

import jax
import jax.numpy as jnp
from jax.experimental import pallas as pl
from jax.experimental.pallas import tpu as pltpu


def _dice_kernel(x_ref, t_ref, inter_ref, union_ref,
                 inter_acc, psum_acc, cnt_acc,
                 *, s_valid, s_tile, needs_mask):
    # x_ref:     (1, C, s_tile) logits tile for one batch element
    # t_ref:     (1, 1, s_tile) integer class indices (int8 or int32)
    # inter_ref: (1, C, 1) per-(batch, class) intersection
    # union_ref: (1, C, 1) per-(batch, class) union
    # *_acc:     (C, 128) f32 VMEM accumulators (lane-wise partial sums)
    k = pl.program_id(1)

    @pl.when(k == 0)
    def _init():
        inter_acc[...] = jnp.zeros_like(inter_acc)
        psum_acc[...] = jnp.zeros_like(psum_acc)
        cnt_acc[...] = jnp.zeros_like(cnt_acc)

    x = x_ref[0].astype(jnp.float32)            # (C, s_tile)
    t = t_ref[0].astype(jnp.int32)              # (1, s_tile)
    C = x.shape[0]

    # per-pixel softmax over the class (sublane) axis == dim=1 in NCHW
    m = jnp.max(x, axis=0, keepdims=True)       # (1, s_tile)
    e = jnp.exp(x - m)                          # (C, s_tile)   (EUP)
    z = jnp.sum(e, axis=0, keepdims=True)       # (1, s_tile)
    inv = pl.reciprocal(z, approx=False)        # 1 recip/pixel instead of C divides
    p = e * inv                                 # (C, s_tile)

    # fused one-hot: (class row == target) mask, no materialized one_hot array
    classes = jax.lax.broadcasted_iota(jnp.int32, (C, s_tile), 0)
    hit = classes == t                          # (C, s_tile) bool
    if needs_mask:
        # mask spatial columns past the true H*W (padding added by the wrapper)
        col = jax.lax.broadcasted_iota(jnp.int32, (1, s_tile), 1) + k * s_tile
        valid = col < s_valid                   # (1, s_tile) bool
        hit = jnp.logical_and(hit, valid)
        p_valid = jnp.where(valid, p, 0.0)
    else:
        p_valid = p

    inter_c = jnp.where(hit, p, 0.0)            # softmax prob at target class
    cnt_c = jnp.where(hit, 1.0, 0.0)            # one-hot count

    # Fold s_tile lanes down to 128 with lane-aligned VPU adds only; the
    # cross-lane (XLU) reduction happens once, in the epilogue below.
    ngroups = s_tile // 128

    def lane_fold(v):
        out = v[:, 0:128]
        for g in range(1, ngroups):
            out = out + v[:, g * 128:(g + 1) * 128]
        return out

    inter_acc[...] += lane_fold(inter_c)
    psum_acc[...] += lane_fold(p_valid)
    cnt_acc[...] += lane_fold(cnt_c)

    @pl.when(k == pl.num_programs(1) - 1)
    def _epilogue():
        inter_ref[0] = jnp.sum(inter_acc[...], axis=1, keepdims=True)
        union_ref[0] = (jnp.sum(psum_acc[...], axis=1, keepdims=True)
                        + jnp.sum(cnt_acc[...], axis=1, keepdims=True))


def _round_up(x, m):
    return pl.cdiv(x, m) * m


def _choose_s_tiling(S, max_s_tile):
    """Pick (s_tile, s_padded): s_tile | s_padded, s_tile % 128 == 0."""
    max_s_tile = max(128, _round_up(max_s_tile, 128))
    s_pad128 = _round_up(S, 128)
    if s_pad128 <= max_s_tile:
        return s_pad128, s_pad128
    return max_s_tile, _round_up(S, max_s_tile)


def dice_loss(logits, target, smooth=1.0, weight=None, max_s_tile=8192):
    """Pallas implementation of DiceLoss.forward.

    max_s_tile: spatial tile width (lanes).  8192 keeps the working set well
    under v7x's 64 MiB VMEM; on v5e/v6e it can be raised to 16384-32768.
    """
    N, C, H, W = logits.shape
    S = H * W
    s_tile, s_pad = _choose_s_tiling(S, max_s_tile)
    num_s_tiles = s_pad // s_tile

    x = logits.reshape(N, C, S).astype(jnp.float32)
    # int8 target (class ids fit) cuts its HBM bytes 4x; kernel widens to int32.
    t_dtype = jnp.int8 if C <= 127 else jnp.int32
    t = target.reshape(N, 1, S).astype(t_dtype)

    needs_mask = s_pad != S
    if needs_mask:
        x = jnp.pad(x, ((0, 0), (0, 0), (0, s_pad - S)))
        t = jnp.pad(t, ((0, 0), (0, 0), (0, s_pad - S)))

    kernel = functools.partial(
        _dice_kernel, s_valid=S, s_tile=s_tile, needs_mask=needs_mask)

    inter, union = pl.pallas_call(
        kernel,
        out_shape=(jax.ShapeDtypeStruct((N, C, 1), jnp.float32),
                   jax.ShapeDtypeStruct((N, C, 1), jnp.float32)),
        grid_spec=pltpu.PrefetchScalarGridSpec(
            num_scalar_prefetch=0,
            grid=(N, num_s_tiles),
            in_specs=[
                pl.BlockSpec((1, C, s_tile), lambda n, k: (n, 0, k)),
                pl.BlockSpec((1, 1, s_tile), lambda n, k: (n, 0, k)),
            ],
            out_specs=[
                pl.BlockSpec((1, C, 1), lambda n, k: (n, 0, 0)),
                pl.BlockSpec((1, C, 1), lambda n, k: (n, 0, 0)),
            ],
            scratch_shapes=[pltpu.VMEM((C, 128), jnp.float32)] * 3,
        ),
        compiler_params=pltpu.CompilerParams(
            dimension_semantics=("parallel", "arbitrary"),
            vmem_limit_bytes=32 * 1024 * 1024),
    )(x, t)

    inter = inter[..., 0]                       # (N, C)
    union = union[..., 0]                       # (N, C)
    if weight is not None:
        w = jnp.asarray(weight, jnp.float32).reshape(1, -1)
        inter = inter * w
        union = union * w
    dice = (2.0 * inter + smooth) / (union + smooth)
    return 1.0 - jnp.mean(dice)


def _dice_loss_ref(logits, target, smooth=1.0, weight=None):
    """Pure-JAX reference mirroring the PyTorch forward."""
    N, C = logits.shape[0], logits.shape[1]
    p = jax.nn.softmax(logits.astype(jnp.float32), axis=1)
    oh = jax.nn.one_hot(target, C, axis=1, dtype=jnp.float32)
    pf = p.reshape(N, C, -1)
    of = oh.reshape(N, C, -1)
    inter = jnp.sum(pf * of, axis=2)
    union = jnp.sum(pf, axis=2) + jnp.sum(of, axis=2)
    if weight is not None:
        w = jnp.asarray(weight, jnp.float32).reshape(1, -1)
        inter = inter * w
        union = union * w
    dice = (2.0 * inter + smooth) / (union + smooth)
    return 1.0 - jnp.mean(dice)


def _check(loss, ref, name):
    assert jnp.allclose(loss, ref, atol=1e-5, rtol=1e-5), (name, loss, ref)


if __name__ == "__main__":
    key = jax.random.PRNGKey(0)

    # Case 1: module-default shapes (N=2, C=4, 16x16), single S tile.
    k1, k2, key = jax.random.split(key, 3)
    N, C, H, W = 2, 4, 16, 16
    logits = jax.random.normal(k1, (N, C, H, W), dtype=jnp.float32)
    target = jax.random.randint(k2, (N, H, W), 0, C, dtype=jnp.int32)
    loss = jax.block_until_ready(dice_loss(logits, target, smooth=1.0))
    _check(loss, _dice_loss_ref(logits, target, smooth=1.0), "base")

    # Case 1b: class weights (applied in wrapper, matching the PyTorch path).
    wvec = jnp.array([0.5, 1.0, 2.0, 1.5], dtype=jnp.float32)
    loss_w = jax.block_until_ready(dice_loss(logits, target, smooth=1.0, weight=wvec))
    _check(loss_w, _dice_loss_ref(logits, target, smooth=1.0, weight=wvec), "weighted")

    # Case 2: odd C (not a multiple of 8), non-128-multiple spatial size, and a
    # small max_s_tile to exercise multi-tile accumulation + padding mask.
    k3, k4, key = jax.random.split(key, 3)
    N2, C2, H2, W2 = 2, 5, 16, 17                  # S = 272 -> padded to 384, 3 tiles
    logits2 = jax.random.normal(k3, (N2, C2, H2, W2), dtype=jnp.float32)
    target2 = jax.random.randint(k4, (N2, H2, W2), 0, C2, dtype=jnp.int32)
    loss2 = jax.block_until_ready(
        dice_loss(logits2, target2, smooth=1.0, max_s_tile=128))
    _check(loss2, _dice_loss_ref(logits2, target2, smooth=1.0), "odd_c_multi_tile")

    print("KERNEL_OK")
</pallas_src>

<mosaic_0001>
module attributes {stable_mosaic.version = 11 : i64} {
  func.func @_dice_kernel(%arg0: i32, %arg1: i32, %arg2: memref<1x4x256xf32, #tpu.memory_space<vmem>>, %arg3: memref<1x1x256xi8, #tpu.memory_space<vmem>>, %arg4: memref<1x4x1xf32, #tpu.memory_space<vmem>>, %arg5: memref<1x4x1xf32, #tpu.memory_space<vmem>>, %arg6: memref<4x128xf32, #tpu.memory_space<vmem>>, %arg7: memref<4x128xf32, #tpu.memory_space<vmem>>, %arg8: memref<4x128xf32, #tpu.memory_space<vmem>>) attributes {dimension_semantics = [#tpu.dimension_semantics<parallel>, #tpu.dimension_semantics<arbitrary>], iteration_bounds = array<i64: 2, 1>, scalar_prefetch = 0 : i64, scratch_operands = 3 : i64, tpu.core_type = #tpu.core_type<tc>, window_params = [{transform_indices = @transform_0, window_bounds = array<i64: 1, 4, 256>}, {transform_indices = @transform_1, window_bounds = array<i64: 1, 1, 256>}, {transform_indices = @transform_2, window_bounds = array<i64: 1, 4, 1>}, {transform_indices = @transform_3, window_bounds = array<i64: 1, 4, 1>}]} {
    %c0_i32 = arith.constant 0 : i32
    %0 = arith.cmpi eq, %arg1, %c0_i32 : i32
    %1 = arith.extui %0 : i1 to i32
    %c0_i32_0 = arith.constant 0 : i32
    %2 = arith.cmpi ne, %1, %c0_i32_0 : i32
    scf.if %2 {
      %cst_24 = arith.constant 0.000000e+00 : f32
      %47 = vector.broadcast %cst_24 : f32 to vector<4x128xf32>
      %c0_25 = arith.constant 0 : index
      %c0_26 = arith.constant 0 : index
      %48 = vector.load %arg6[%c0_25, %c0_26] : memref<4x128xf32, #tpu.memory_space<vmem>>, vector<4x128xf32>
      tpu.vector_store %arg6[%c0_25, %c0_26], %47 {strides = array<i32>} : memref<4x128xf32, #tpu.memory_space<vmem>>, vector<4x128xf32>,
      %cst_27 = arith.constant 0.000000e+00 : f32
      %49 = vector.broadcast %cst_27 : f32 to vector<4x128xf32>
      %c0_28 = arith.constant 0 : index
      %c0_29 = arith.constant 0 : index
      %50 = vector.load %arg7[%c0_28, %c0_29] : memref<4x128xf32, #tpu.memory_space<vmem>>, vector<4x128xf32>
      tpu.vector_store %arg7[%c0_28, %c0_29], %49 {strides = array<i32>} : memref<4x128xf32, #tpu.memory_space<vmem>>, vector<4x128xf32>,
      %cst_30 = arith.constant 0.000000e+00 : f32
      %51 = vector.broadcast %cst_30 : f32 to vector<4x128xf32>
      %c0_31 = arith.constant 0 : index
      %c0_32 = arith.constant 0 : index
      %52 = vector.load %arg8[%c0_31, %c0_32] : memref<4x128xf32, #tpu.memory_space<vmem>>, vector<4x128xf32>
      tpu.vector_store %arg8[%c0_31, %c0_32], %51 {strides = array<i32>} : memref<4x128xf32, #tpu.memory_space<vmem>>, vector<4x128xf32>,
    } else {
    }
    %c0 = arith.constant 0 : index
    %c0_1 = arith.constant 0 : index
    %c0_2 = arith.constant 0 : index
    %3 = vector.load %arg2[%c0, %c0_1, %c0_2] : memref<1x4x256xf32, #tpu.memory_space<vmem>>, vector<1x4x256xf32>
    %4 = vector.shape_cast %3 : vector<1x4x256xf32> to vector<4x256xf32>
    %c0_3 = arith.constant 0 : index
    %c0_4 = arith.constant 0 : index
    %c0_5 = arith.constant 0 : index
    %5 = vector.load %arg3[%c0_3, %c0_4, %c0_5] : memref<1x1x256xi8, #tpu.memory_space<vmem>>, vector<1x1x256xi8>
    %6 = vector.shape_cast %5 : vector<1x1x256xi8> to vector<1x256xi8>
    %7 = arith.extsi %6 : vector<1x256xi8> to vector<1x256xi32>
    %cst = arith.constant dense<0xFF800000> : vector<256xf32>
    %8 = vector.multi_reduction <maximumf>, %4, %cst [0] : vector<4x256xf32> to vector<256xf32>
    %9 = vector.shape_cast %8 : vector<256xf32> to vector<1x256xf32>
    %10 = vector.broadcast %9 : vector<1x256xf32> to vector<4x256xf32>
    %11 = arith.subf %4, %10 : vector<4x256xf32>
    %12 = math.exp %11 : vector<4x256xf32>
    %cst_6 = arith.constant dense<0.000000e+00> : vector<256xf32>
    %13 = vector.multi_reduction <add>, %12, %cst_6 [0] : vector<4x256xf32> to vector<256xf32>
    %14 = vector.shape_cast %13 : vector<256xf32> to vector<1x256xf32>
    %15 = tpu.reciprocal %14 : vector<1x256xf32> -> vector<1x256xf32>
    %16 = vector.broadcast %15 : vector<1x256xf32> to vector<4x256xf32>
    %17 = arith.mulf %12, %16 : vector<4x256xf32>
    %18 = tpu.iota {dimensions = array<i32: 0>} : vector<4x256xi32>
    %19 = vector.broadcast %7 : vector<1x256xi32> to vector<4x256xi32>
    %20 = arith.cmpi eq, %18, %19 : vector<4x256xi32>
    %cst_7 = arith.constant 0.000000e+00 : f32
    %21 = vector.broadcast %cst_7 : f32 to vector<4x256xf32>
    %22 = arith.select %20, %17, %21 : vector<4x256xi1>, vector<4x256xf32>
    %cst_8 = arith.constant 1.000000e+00 : f32
    %cst_9 = arith.constant 0.000000e+00 : f32
    %23 = vector.broadcast %cst_8 : f32 to vector<4x256xf32>
    %24 = vector.broadcast %cst_9 : f32 to vector<4x256xf32>
    %25 = arith.select %20, %23, %24 : vector<4x256xi1>, vector<4x256xf32>
    %c0_10 = arith.constant 0 : index
    %c0_11 = arith.constant 0 : index
    %26 = vector.load %arg6[%c0_10, %c0_11] : memref<4x128xf32, #tpu.memory_space<vmem>>, vector<4x128xf32>
    %27 = vector.extract_strided_slice %22 {offsets = [0, 0], sizes = [4, 128], strides = [1, 1]} : vector<4x256xf32> to vector<4x128xf32>
    %28 = vector.extract_strided_slice %22 {offsets = [0, 128], sizes = [4, 128], strides = [1, 1]} : vector<4x256xf32> to vector<4x128xf32>
    %29 = arith.addf %27, %28 : vector<4x128xf32>
    %30 = arith.addf %26, %29 : vector<4x128xf32>
    %c0_12 = arith.constant 0 : index
    %c0_13 = arith.constant 0 : index
    %31 = vector.load %arg6[%c0_12, %c0_13] : memref<4x128xf32, #tpu.memory_space<vmem>>, vector<4x128xf32>
    tpu.vector_store %arg6[%c0_12, %c0_13], %30 {strides = array<i32>} : memref<4x128xf32, #tpu.memory_space<vmem>>, vector<4x128xf32>,
    %c0_14 = arith.constant 0 : index
    %c0_15 = arith.constant 0 : index
    %32 = vector.load %arg7[%c0_14, %c0_15] : memref<4x128xf32, #tpu.memory_space<vmem>>, vector<4x128xf32>
    %33 = vector.extract_strided_slice %17 {offsets = [0, 0], sizes = [4, 128], strides = [1, 1]} : vector<4x256xf32> to vector<4x128xf32>
    %34 = vector.extract_strided_slice %17 {offsets = [0, 128], sizes = [4, 128], strides = [1, 1]} : vector<4x256xf32> to vector<4x128xf32>
    %35 = arith.addf %33, %34 : vector<4x128xf32>
    %36 = arith.addf %32, %35 : vector<4x128xf32>
    %c0_16 = arith.constant 0 : index
    %c0_17 = arith.constant 0 : index
    %37 = vector.load %arg7[%c0_16, %c0_17] : memref<4x128xf32, #tpu.memory_space<vmem>>, vector<4x128xf32>
    tpu.vector_store %arg7[%c0_16, %c0_17], %36 {strides = array<i32>} : memref<4x128xf32, #tpu.memory_space<vmem>>, vector<4x128xf32>,
    %c0_18 = arith.constant 0 : index
    %c0_19 = arith.constant 0 : index
    %38 = vector.load %arg8[%c0_18, %c0_19] : memref<4x128xf32, #tpu.memory_space<vmem>>, vector<4x128xf32>
    %39 = vector.extract_strided_slice %25 {offsets = [0, 0], sizes = [4, 128], strides = [1, 1]} : vector<4x256xf32> to vector<4x128xf32>
    %40 = vector.extract_strided_slice %25 {offsets = [0, 128], sizes = [4, 128], strides = [1, 1]} : vector<4x256xf32> to vector<4x128xf32>
    %41 = arith.addf %39, %40 : vector<4x128xf32>
    %42 = arith.addf %38, %41 : vector<4x128xf32>
    %c0_20 = arith.constant 0 : index
    %c0_21 = arith.constant 0 : index
    %43 = vector.load %arg8[%c0_20, %c0_21] : memref<4x128xf32, #tpu.memory_space<vmem>>, vector<4x128xf32>
    tpu.vector_store %arg8[%c0_20, %c0_21], %42 {strides = array<i32>} : memref<4x128xf32, #tpu.memory_space<vmem>>, vector<4x128xf32>,
    %c0_i32_22 = arith.constant 0 : i32
    %44 = arith.cmpi eq, %arg1, %c0_i32_22 : i32
    %45 = arith.extui %44 : i1 to i32
    %c0_i32_23 = arith.constant 0 : i32
    %46 = arith.cmpi ne, %45, %c0_i32_23 : i32
    scf.if %46 {
      %c0_24 = arith.constant 0 : index
      %c0_25 = arith.constant 0 : index
      %47 = vector.load %arg6[%c0_24, %c0_25] : memref<4x128xf32, #tpu.memory_space<vmem>>, vector<4x128xf32>
      %cst_26 = arith.constant dense<0.000000e+00> : vector<4xf32>
      %48 = vector.multi_reduction <add>, %47, %cst_26 [1] : vector<4x128xf32> to vector<4xf32>
      %49 = vector.shape_cast %48 : vector<4xf32> to vector<4x1xf32>
      %c0_27 = arith.constant 0 : index
      %c0_28 = arith.constant 0 : index
      %c0_29 = arith.constant 0 : index
      %50 = vector.load %arg4[%c0_27, %c0_28, %c0_29] : memref<1x4x1xf32, #tpu.memory_space<vmem>>, vector<1x4x1xf32>
      %51 = vector.shape_cast %50 : vector<1x4x1xf32> to vector<4x1xf32>
      %52 = vector.shape_cast %49 : vector<4x1xf32> to vector<1x4x1xf32>
      tpu.vector_store %arg4[%c0_27, %c0_28, %c0_29], %52 {strides = array<i32>} : memref<1x4x1xf32, #tpu.memory_space<vmem>>, vector<1x4x1xf32>,
      %c0_30 = arith.constant 0 : index
      %c0_31 = arith.constant 0 : index
      %53 = vector.load %arg7[%c0_30, %c0_31] : memref<4x128xf32, #tpu.memory_space<vmem>>, vector<4x128xf32>
      %cst_32 = arith.constant dense<0.000000e+00> : vector<4xf32>
      %54 = vector.multi_reduction <add>, %53, %cst_32 [1] : vector<4x128xf32> to vector<4xf32>
      %55 = vector.shape_cast %54 : vector<4xf32> to vector<4x1xf32>
      %c0_33 = arith.constant 0 : index
      %c0_34 = arith.constant 0 : index
      %56 = vector.load %arg8[%c0_33, %c0_34] : memref<4x128xf32, #tpu.memory_space<vmem>>, vector<4x128xf32>
      %cst_35 = arith.constant dense<0.000000e+00> : vector<4xf32>
      %57 = vector.multi_reduction <add>, %56, %cst_35 [1] : vector<4x128xf32> to vector<4xf32>
      %58 = vector.shape_cast %57 : vector<4xf32> to vector<4x1xf32>
      %59 = arith.addf %55, %58 : vector<4x1xf32>
      %c0_36 = arith.constant 0 : index
      %c0_37 = arith.constant 0 : index
      %c0_38 = arith.constant 0 : index
      %60 = vector.load %arg5[%c0_36, %c0_37, %c0_38] : memref<1x4x1xf32, #tpu.memory_space<vmem>>, vector<1x4x1xf32>
      %61 = vector.shape_cast %60 : vector<1x4x1xf32> to vector<4x1xf32>
      %62 = vector.shape_cast %59 : vector<4x1xf32> to vector<1x4x1xf32>
      tpu.vector_store %arg5[%c0_36, %c0_37, %c0_38], %62 {strides = array<i32>} : memref<1x4x1xf32, #tpu.memory_space<vmem>>, vector<1x4x1xf32>,
    } else {
    }
    return
  }
  func.func @transform_0(%arg0: i32, %arg1: i32) -> (i32, i32, i32) {
    %c0_i32 = arith.constant 0 : i32
    %c0_i32_0 = arith.constant 0 : i32
    return %arg0, %c0_i32, %arg1 : i32, i32, i32
  }
  func.func @transform_1(%arg0: i32, %arg1: i32) -> (i32, i32, i32) {
    %c0_i32 = arith.constant 0 : i32
    %c0_i32_0 = arith.constant 0 : i32
    return %arg0, %c0_i32, %arg1 : i32, i32, i32
  }
  func.func @transform_2(%arg0: i32, %arg1: i32) -> (i32, i32, i32) {
    %c0_i32 = arith.constant 0 : i32
    %c0_i32_0 = arith.constant 0 : i32
    %c0_i32_1 = arith.constant 0 : i32
    return %arg0, %c0_i32, %c0_i32_0 : i32, i32, i32
  }
  func.func @transform_3(%arg0: i32, %arg1: i32) -> (i32, i32, i32) {
    %c0_i32 = arith.constant 0 : i32
    %c0_i32_0 = arith.constant 0 : i32
    %c0_i32_1 = arith.constant 0 : i32
    return %arg0, %c0_i32, %c0_i32_0 : i32, i32, i32
  }
}

</mosaic_0001>

<llo_original>
// kernel: tpu_custom_call.1
$region0: #{tpu_custom_call.1}
  #allocation0 [shape = 'u32[]', space=smem, size = 0x4, offset = 0x4, fixed_abs, tag = 'smem constant byte address 0x4 - core index']
  #allocation1 [shape = 'u32[144,128]{1,0:T(1,128)}', space=vmem, size = 0x12000, scoped, tag = 'internal scratch']
  #allocation2 [shape = 'f32[4,128]{1,0:T(4,128)}', space=vmem, size = 0x800, scoped, tag = 'scratch operand']
  #allocation3 [shape = 'f32[4,128]{1,0:T(4,128)}', space=vmem, size = 0x800, scoped, tag = 'scratch operand']
  #allocation4 [shape = 'f32[4,128]{1,0:T(4,128)}', space=vmem, size = 0x800, scoped, tag = 'scratch operand']
  %s0 = inlined_call_operand.hbm [shape: f32[2,4,256], index: 0, kind: input, shape index: {}]
  %s1 = inlined_call_operand.vmem [shape: s8[2,1,256], index: 1, kind: input, shape index: {}]
  %s2 = inlined_call_operand.vmem [shape: f32[2,4,1], index: 2, kind: output, shape index: {0}]
  %s3 = inlined_call_operand.vmem [shape: f32[2,4,1], index: 3, kind: output, shape index: {1}]
  %4 = xla_tuple %s2, %s3
  %s5 = sld [smem:[#allocation0]]
  $region61: #{tpu_custom_call.1} parent=0
    _
  %s7 = ssub.s32 1, %s5
  %s8 = scalar_select 0, %s7, %s5
  $region1: #{tpu_custom_call.1} parent=0
    #allocation5 [shape = 'u8[8192]{0}', space=vmem, size = 0x2000, scoped, tag = 'input window, operand 0']
    #allocation6 [shape = 's32[2]{0}', space=sflag, size = 0x8, scoped, tag = 'scoped memory for tpu_custom_call.1']
    %9 = vsyncpa [#allocation6], 0
    %s10 = scalar_lea.sflag [#allocation6], 1
    %11 = vsyncpa %s10, 0
    loop: start=0, step=1, limit=4
    $region2: #{tpu_custom_call.1} parent=1 // loop_pre_header
      _
    $region3: #{tpu_custom_call.1} parent=1 // loop_header
      %s13 = sphi 0, %s17
      %p14 = scmp.ge.s32.totalorder %s13, 4
      %s20 = sphi 0, %s32
      %s21 = sphi 0, %s28
      %s22 = sphi 0, %s20
      %s23 = sphi 0, %s21
      %s24 = sphi 0, %s22
      %s25 = sphi 0, %s23
      %s37 = sphi 0, %s39
      %s40 = sphi 0, %s37
      %s41 = sphi 0, %s40
      %s57 = sphi 0, %s41
      %s65 = sphi 0, %s67
      %s68 = sphi 0, %s65
      %s69 = sphi 0, %s68
      %s85 = sphi 0, %s69
      %s91 = sphi 0, %s93
      %s94 = sphi 0, %s91
      %s95 = sphi 0, %s94
      %s111 = sphi 0, %s95
      %s117 = sphi 0, %s119
      %s120 = sphi 0, %s117
      %s121 = sphi 0, %s120
      %s137 = sphi 0, %s121
    $region4: #{tpu_custom_call.1} parent=1 // loop_header_branch
      %16 = sbr.rel (%p14) target = $region8
    $region5: #{tpu_custom_call.1} parent=1 // loop_body
      %s18 = ssub.s32 %s13, 1
      %s19 = ssub.s32 %s13, 2
      %s26 = sadd.s32 1, %s21
      %p27 = scmp.ge.s32.totalorder %s26, 1
      %s28 = scalar_select %p27, 0, %s26
      %s29 = sadd.s32 1, %s20
      %s30 = scalar_select %p27, %s29, %s20
      %p31 = scmp.ge.s32.totalorder %s30, 2
      %s32 = scalar_select %p31, 0, %s30
      %s33 = ssub.s32 %s20, %s32
      %s34 = ssub.s32 %s21, %s28
      %s35 = sor.u32 %s33, %s34
      %p36 = scmp.eq.s32.totalorder %s35, 0
      %s38 = sadd.s32 %s37, 1
      %s39 = scalar_select %p36, %s37, %s38
      %p42 = pneg %p36
      %p43 = scmp.eq.s32.totalorder %s13, 1
      %p44 = por %p42, %p43
      %p45 = scmp.ne.s32.totalorder %s37, %s40
      %p46 = scmp.eq.s32.totalorder %s13, 0
      %p47 = por %p45, %p46
      %p48 = scmp.ne.s32.totalorder %s37, %s40
      %p49 = scmp.eq.s32.totalorder %s18, 1
      %p50 = por %p48, %p49
      %p51 = scmp.ne.s32.totalorder %s40, %s41
      %p52 = scmp.eq.s32.totalorder %s18, 0
      %p53 = por %p51, %p52
      %p54 = scmp.ne.s32.totalorder %s40, %s41
      %p55 = scmp.eq.s32.totalorder %s19, 1
      %p56 = por %p54, %p55
      %p58 = scmp.ne.s32.totalorder %s41, %s57
      %p59 = scmp.eq.s32.totalorder %s19, 0
      %p60 = por %p58, %p59
      %s61 = ssub.s32 %s20, %s32
      %s62 = ssub.s32 %s21, %s28
      %s63 = sor.u32 %s61, %s62
      %p64 = scmp.eq.s32.totalorder %s63, 0
      %s66 = sadd.s32 %s65, 1
      %s67 = scalar_select %p64, %s65, %s66
      %p70 = pneg %p64
      %p71 = scmp.eq.s32.totalorder %s13, 1
      %p72 = por %p70, %p71
      %p73 = scmp.ne.s32.totalorder %s65, %s68
      %p74 = scmp.eq.s32.totalorder %s13, 0
      %p75 = por %p73, %p74
      %p76 = scmp.ne.s32.totalorder %s65, %s68
      %p77 = scmp.eq.s32.totalorder %s18, 1
      %p78 = por %p76, %p77
      %p79 = scmp.ne.s32.totalorder %s68, %s69
      %p80 = scmp.eq.s32.totalorder %s18, 0
      %p81 = por %p79, %p80
      %p82 = scmp.ne.s32.totalorder %s68, %s69
      %p83 = scmp.eq.s32.totalorder %s19, 1
      %p84 = por %p82, %p83
      %p86 = scmp.ne.s32.totalorder %s69, %s85
      %p87 = scmp.eq.s32.totalorder %s19, 0
      %p88 = por %p86, %p87
      %s89 = ssub.s32 %s20, %s32
      %p90 = scmp.eq.s32.totalorder %s89, 0
      %s92 = sadd.s32 %s91, 1
      %s93 = scalar_select %p90, %s91, %s92
      %p96 = pneg %p90
      %p97 = scmp.eq.s32.totalorder %s13, 1
      %p98 = por %p96, %p97
      %p99 = scmp.ne.s32.totalorder %s91, %s94
      %p100 = scmp.eq.s32.totalorder %s13, 0
      %p101 = por %p99, %p100
      %p102 = scmp.ne.s32.totalorder %s91, %s94
      %p103 = scmp.eq.s32.totalorder %s18, 1
      %p104 = por %p102, %p103
      %p105 = scmp.ne.s32.totalorder %s94, %s95
      %p106 = scmp.eq.s32.totalorder %s18, 0
      %p107 = por %p105, %p106
      %p108 = scmp.ne.s32.totalorder %s94, %s95
      %p109 = scmp.eq.s32.totalorder %s19, 1
      %p110 = por %p108, %p109
      %p112 = scmp.ne.s32.totalorder %s95, %s111
      %p113 = scmp.eq.s32.totalorder %s19, 0
      %p114 = por %p112, %p113
      %s115 = ssub.s32 %s20, %s32
      %p116 = scmp.eq.s32.totalorder %s115, 0
      %s118 = sadd.s32 %s117, 1
      %s119 = scalar_select %p116, %s117, %s118
      %p122 = pneg %p116
      %p123 = scmp.eq.s32.totalorder %s13, 1
      %p124 = por %p122, %p123
      %p125 = scmp.ne.s32.totalorder %s117, %s120
      %p126 = scmp.eq.s32.totalorder %s13, 0
      %p127 = por %p125, %p126
      %p128 = scmp.ne.s32.totalorder %s117, %s120
      %p129 = scmp.eq.s32.totalorder %s18, 1
      %p130 = por %p128, %p129
      %p131 = scmp.ne.s32.totalorder %s120, %s121
      %p132 = scmp.eq.s32.totalorder %s18, 0
      %p133 = por %p131, %p132
      %p134 = scmp.ne.s32.totalorder %s120, %s121
      %p135 = scmp.eq.s32.totalorder %s19, 1
      %p136 = por %p134, %p135
      %p138 = scmp.ne.s32.totalorder %s121, %s137
      %p139 = scmp.eq.s32.totalorder %s19, 0
      %p140 = por %p138, %p139
      %p141 = scmp.le.s32.totalorder 1, %s13
      %p142 = scmp.lt.s32.totalorder %s13, 3
      %p143 = pnand %p141, %p142
      %p144 = pneg %p143
      // Predicated region
      $region9: #{tpu_custom_call.1} parent=5 // pred_check
        _
      $region10: #{tpu_custom_call.1} parent=5 // pred_check_branch
        %146 = sbr.rel (%p143) target = $region12
      $region11: #{tpu_custom_call.1} parent=5 // pred_region
        %s147 = ssub.s32 %s13, 1
      $region12: #{tpu_custom_call.1} parent=5 // pred_fallthru
        _
      %p148 = scmp.lt.s32.totalorder %s13, 2
      // Predicated region
      $region13: #{tpu_custom_call.1} parent=5 // pred_check
        %p149 = pneg %p148
      $region14: #{tpu_custom_call.1} parent=5 // pred_check_branch
        %151 = sbr.rel (%p149) target = $region16
      $region15: #{tpu_custom_call.1} parent=5 // pred_region
        // Predicated region
        $region17: #{tpu_custom_call.1} parent=15 // pred_check
          %p152 = pneg %p47
        $region18: #{tpu_custom_call.1} parent=15 // pred_check_branch
          %154 = sbr.rel (%p152) target = $region20
        $region19: #{tpu_custom_call.1} parent=15 // pred_region
          %s155 = sand.u32 %s37, 1
          %s156 = scalar_lea.sflag [#allocation6], %s155
          %s157 = sand.u32 %s37, 1
          %s158 = smul.addr %s157, 8
          %s159 = scalar_lea.vmem [#allocation5], %s158
          %s160 = smul.u32 2, %s21
          %s162 = ssub.s32 128, 128
          %163 = vsyncadd %s156, %s162
          %s164 = smul.addr %s20, 2
          %s165 = sadd.s32 %s160, %s164
          %s166 = smul.addr %s165, 64
          %s167 = scalar_lea.hbm %s0, %s166
          %s169 = sshll.u32 %s159, 4
          %s170 = int_to_ptr.vmem [resolvable:$true] %s169
          %172 = dma.hbm_to_vmem [thread:$0]  %s167, 128, %s170, %s156
        $region20: #{tpu_custom_call.1} parent=15 // pred_fallthru
          _
        // Predicated region
        $region21: #{tpu_custom_call.1} parent=15 // pred_check
          %p173 = pneg %p75
        $region22: #{tpu_custom_call.1} parent=15 // pred_check_branch
          %175 = sbr.rel (%p173) target = $region24
        $region23: #{tpu_custom_call.1} parent=15 // pred_region
          %s176 = smul.u32 2, %s21
          %p177 = scmp.lt.s32.totalorder %s20, 1
          %s178 = scalar_select %p177, %s20, 1
          %p179 = scmp.lt.s32.totalorder %s176, 1
          %s180 = scalar_select %p179, %s176, 1
          %s181 = smul.addr %s178, 2
          %s182 = sadd.s32 %s180, %s181
          %s183 = scalar_lea.vmem %s1, %s182
          %s184 = smul.u32 2, %s21
        $region24: #{tpu_custom_call.1} parent=15 // pred_fallthru
          _
      $region16: #{tpu_custom_call.1} parent=5 // pred_fallthru
        _
      %p185 = scmp.le.s32.totalorder 1, %s13
      %p186 = scmp.lt.s32.totalorder %s13, 3
      %p187 = pnand %p185, %p186
      %p188 = pneg %p187
      // Predicated region
      $region25: #{tpu_custom_call.1} parent=5 // pred_check
        _
      $region26: #{tpu_custom_call.1} parent=5 // pred_check_branch
        %190 = sbr.rel (%p187) target = $region28
      $region27: #{tpu_custom_call.1} parent=5 // pred_region
        %s191 = ssub.s32 %s13, 1
        %s192 = sand.u32 %s40, 1
        %s193 = scalar_lea.sflag [#allocation6], %s192
        %s194 = sand.u32 %s40, 1
        %s195 = smul.addr %s194, 8
        %s196 = scalar_lea.vmem [#allocation5], %s195
        // Predicated region
        $region29: #{tpu_custom_call.1} parent=27 // pred_check
          %p197 = pneg %p53
        $region30: #{tpu_custom_call.1} parent=27 // pred_check_branch
          %199 = sbr.rel (%p197) target = $region32
        $region31: #{tpu_custom_call.1} parent=27 // pred_region
          %200 = dma.done %s193, 128
        $region32: #{tpu_custom_call.1} parent=27 // pred_fallthru
          _
        %s201 = sand.u32 %s40, 1
        %s202 = scalar_lea.sflag [#allocation6], %s201
        %s203 = sand.u32 %s40, 1
        %s204 = smul.addr %s203, 8
        %s205 = scalar_lea.vmem [#allocation5], %s204
        %p206 = pneg %p53
        %p207 = pneg %p50
        %s208 = smul.u32 2, %s23
        %p209 = scmp.lt.s32.totalorder %s22, 1
        %s210 = scalar_select %p209, %s22, 1
        %p211 = scmp.lt.s32.totalorder %s208, 1
        %s212 = scalar_select %p211, %s208, 1
        %s213 = smul.addr %s210, 2
        %s214 = sadd.s32 %s212, %s213
        %s215 = scalar_lea.vmem %s1, %s214
        %p216 = pneg %p81
        %p217 = pneg %p78
        %p218 = pneg %p107
        %p219 = pneg %p104
        %p220 = scmp.lt.s32.totalorder %s22, 1
        %s221 = scalar_select %p220, %s22, 1
        %s222 = smul.addr %s221, 4
        %s223 = scalar_lea.vmem %s2, %s222
        %p224 = pneg %p133
        %p225 = pneg %p130
        %p226 = scmp.lt.s32.totalorder %s22, 1
        %s227 = scalar_select %p226, %s22, 1
        %s228 = smul.addr %s227, 4
        %s229 = scalar_lea.vmem %s3, %s228
        %s230 = smul.u32 2, %s23
        %s231 = smul.u32 2, %s23
        %p232 = scmp.lt.s32.totalorder %s22, 1
        %s233 = scalar_select %p232, %s22, 1
        %p234 = scmp.lt.s32.totalorder %s231, 1
        %s235 = scalar_select %p234, %s231, 1
        %s236 = smul.addr %s233, 2
        %s237 = sadd.s32 %s235, %s236
        %s238 = scalar_lea.vmem %s1, %s237
        %s239 = smul.u32 2, %s23
        %p240 = scmp.lt.s32.totalorder %s22, 1
        %s241 = scalar_select %p240, %s22, 1
        %s242 = smul.addr %s241, 4
        %s243 = scalar_lea.vmem %s2, %s242
        %p244 = scmp.lt.s32.totalorder %s22, 1
        %s245 = scalar_select %p244, %s22, 1
        %s246 = smul.addr %s245, 4
        %s247 = scalar_lea.vmem %s3, %s246
        %p248 = scmp.eq.s32.totalorder %s23, 0
        // Predicated region
        $region33: #{tpu_custom_call.1} parent=27 // pred_check
          %p249 = pneg %p248
        $region34: #{tpu_custom_call.1} parent=27 // pred_check_branch
          %251 = sbr.rel (%p249) target = $region36
        $region35: #{tpu_custom_call.1} parent=27 // pred_region
          %252 = vst [vmem:[#allocation2] sm:$0xf] 0.0
          %253 = vst [vmem:[#allocation3] sm:$0xf] 0.0
          %254 = vst [vmem:[#allocation4] sm:$0xf] 0.0
        $region36: #{tpu_custom_call.1} parent=27 // pred_fallthru
          _
        %v255 = vld [vmem:[%s196] sm:$0xff]
        %v256 = vld [vmem:[%s238] sm:$0x3]
        %v257 = vunpack.c.0.s8 %v256
        %v259 = vcombine.high %v255, %v255
        %vm261 = vcmask 1043456
        %v262 = vsel %vm261, %v255, -inf
        %v263 = vrot.slane %v262, 4
        %v264 = vmax.f32 %v262, %v263
        %v265 = vrot.slane %v264, 2
        %v266 = vmax.f32 %v264, %v265
        %v267 = vrot.slane %v266, 1
        %v268 = vmax.f32 %v266, %v267
        %v269 = vsel %vm261, %v259, -inf
        %v270 = vrot.slane %v269, 4
        %v271 = vmax.f32 %v269, %v270
        %v272 = vrot.slane %v271, 2
        %v273 = vmax.f32 %v271, %v272
        %v274 = vrot.slane %v273, 1
        %v275 = vmax.f32 %v273, %v274
        %v278 = vcombine.low %v268, %v275
        %v280 = vsub.f32 %v255, %v278
        %v281 = vmul.f32 %v280, 1.442695
        %v282 = vpow.pop %v281
        %v284 = vcombine.high %v282, %v282
        %v286 = vsel %vm261, %v282, 0.0
        %v287 = vrot.slane %v286, 4
        %v288 = vadd.f32 %v286, %v287
        %v289 = vrot.slane %v288, 2
        %v290 = vadd.f32 %v288, %v289
        %v291 = vrot.slane %v290, 1
        %v292 = vadd.f32 %v290, %v291
        %v293 = vsel %vm261, %v284, 0.0
        %v294 = vrot.slane %v293, 4
        %v295 = vadd.f32 %v293, %v294
        %v296 = vrot.slane %v295, 2
        %v297 = vadd.f32 %v295, %v296
        %v298 = vrot.slane %v297, 1
        %v299 = vadd.f32 %v297, %v298
        %v300 = vrcp.pop %v292
        %v301 = vrcp.pop %v299
        %v304 = vcombine.low %v300, %v301
        %v306 = vmul.f32 %v282, %v304
        %v307 = vlaneseq
        %v308 = vshrl.u32 %v307, 7
        %v309 = vlaneseq
        %v310 = vshrl.u32 %v309, 7
        %v311 = vsub.s32 0, %v310
        %v312 = vrot.slane %v257, %v311
        %v313 = vlaneseq
        %v314 = vshrl.u32 %v313, 7
        %v315 = vsub.s32 4, %v314
        %v316 = vrot.slane %v257, %v315
        %v317 = vlaneseq
        %v318 = vshrl.u32 %v317, 7
        %v319 = vsub.s32 0, %v318
        %v320 = vrot.slane %v312, %v319
        %v321 = vlaneseq
        %v322 = vshrl.u32 %v321, 7
        %v323 = vsub.s32 0, %v322
        %v324 = vrot.slane %v316, %v323
        %vm325 = vcmp.eq.s32.totalorder %v308, %v320
        %vm326 = vcmp.eq.s32.totalorder %v308, %v324
        %v328 = vcombine.high %v306, %v306
        %v330 = vsel %vm325, %v306, 0.0
        %v331 = vsel %vm326, %v328, 0.0
        %v332 = vsel %vm325, 1.0, 0.0
        %v333 = vsel %vm326, 1.0, 0.0
        %v334 = vld [vmem:[#allocation2] sm:$0xf]
        %v335 = vadd.f32 %v330, %v331
        %v336 = vadd.f32 %v334, %v335
        %337 = vst [vmem:[#allocation2] sm:$0xf] %v336
        %v338 = vld [vmem:[#allocation3] sm:$0xf]
        %v339 = vrot.slane %v306, 4
        %v341 = vadd.f32 %v306, %v339
        %v342 = vadd.f32 %v338, %v341
        %343 = vst [vmem:[#allocation3] sm:$0xf] %v342
        %v344 = vld [vmem:[#allocation4] sm:$0xf]
        %v345 = vadd.f32 %v332, %v333
        %v346 = vadd.f32 %v344, %v345
        %347 = vst [vmem:[#allocation4] sm:$0xf] %v346
        // Predicated region
        $region37: #{tpu_custom_call.1} parent=27 // pred_check
          %p348 = pneg %p248
        $region38: #{tpu_custom_call.1} parent=27 // pred_check_branch
          %350 = sbr.rel (%p348) target = $region40
        $region39: #{tpu_custom_call.1} parent=27 // pred_region
          %v351 = vld [vmem:[#allocation2] sm:$0xf]
          %v352 = vsel %vm261, %v351, 0.0
          %353 = vadd.xlane.f32.xlu0 %v352
          %v354 = vpop.xlane.xlu0 %353
          %vm355 = vcmask 3072
          %356 = vst.msk [vmem:[%s243] sm:$0xf] %vm355, %v354
          %v357 = vld [vmem:[#allocation3] sm:$0xf]
          %v358 = vsel %vm261, %v357, 0.0
          %359 = vadd.xlane.f32.xlu0 %v358
          %v360 = vpop.xlane.xlu0 %359
          %v361 = vld [vmem:[#allocation4] sm:$0xf]
          %v362 = vsel %vm261, %v361, 0.0
          %363 = vadd.xlane.f32.xlu0 %v362
          %v364 = vpop.xlane.xlu0 %363
          %v365 = vadd.f32 %v360, %v364
          %366 = vst.msk [vmem:[%s247] sm:$0xf] %vm355, %v365
        $region40: #{tpu_custom_call.1} parent=27 // pred_fallthru
          _
        %p367 = scmp.lt.s32.totalorder %s22, 1
        %s368 = scalar_select %p367, %s22, 1
        %s369 = smul.addr %s368, 4
        %s370 = scalar_lea.vmem %s2, %s369
        %p371 = scmp.lt.s32.totalorder %s22, 1
        %s372 = scalar_select %p371, %s22, 1
        %s373 = smul.addr %s372, 4
        %s374 = scalar_lea.vmem %s3, %s373
        // Predicated region
        $region41: #{tpu_custom_call.1} parent=27 // pred_check
          %p375 = pneg %p104
        $region42: #{tpu_custom_call.1} parent=27 // pred_check_branch
          %377 = sbr.rel (%p375) target = $region44
        $region43: #{tpu_custom_call.1} parent=27 // pred_region
          _
        $region44: #{tpu_custom_call.1} parent=27 // pred_fallthru
          _
        // Predicated region
        $region45: #{tpu_custom_call.1} parent=27 // pred_check
          %p378 = pneg %p130
        $region46: #{tpu_custom_call.1} parent=27 // pred_check_branch
          %380 = sbr.rel (%p378) target = $region48
        $region47: #{tpu_custom_call.1} parent=27 // pred_region
          _
        $region48: #{tpu_custom_call.1} parent=27 // pred_fallthru
          _
      $region28: #{tpu_custom_call.1} parent=5 // pred_fallthru
        _
      %p381 = scmp.le.s32.totalorder 2, %s13
      // Predicated region
      $region49: #{tpu_custom_call.1} parent=5 // pred_check
        %p382 = pneg %p381
      $region50: #{tpu_custom_call.1} parent=5 // pred_check_branch
        %384 = sbr.rel (%p382) target = $region52
      $region51: #{tpu_custom_call.1} parent=5 // pred_region
        %s385 = ssub.s32 %s13, 2
        // Predicated region
        $region53: #{tpu_custom_call.1} parent=51 // pred_check
          %p386 = pneg %p110
        $region54: #{tpu_custom_call.1} parent=51 // pred_check_branch
          %388 = sbr.rel (%p386) target = $region56
        $region55: #{tpu_custom_call.1} parent=51 // pred_region
          %p389 = scmp.lt.s32.totalorder %s24, 1
          %s390 = scalar_select %p389, %s24, 1
          %s391 = smul.addr %s390, 4
          %s392 = scalar_lea.vmem %s2, %s391
        $region56: #{tpu_custom_call.1} parent=51 // pred_fallthru
          _
        // Predicated region
        $region57: #{tpu_custom_call.1} parent=51 // pred_check
          %p393 = pneg %p136
        $region58: #{tpu_custom_call.1} parent=51 // pred_check_branch
          %395 = sbr.rel (%p393) target = $region60
        $region59: #{tpu_custom_call.1} parent=51 // pred_region
          %p396 = scmp.lt.s32.totalorder %s24, 1
          %s397 = scalar_select %p396, %s24, 1
          %s398 = smul.addr %s397, 4
          %s399 = scalar_lea.vmem %s3, %s398
        $region60: #{tpu_custom_call.1} parent=51 // pred_fallthru
          _
      $region52: #{tpu_custom_call.1} parent=5 // pred_fallthru
        _
    $region6: #{tpu_custom_call.1} parent=1 // loop_footer
      %s17 = sadd.s32 1, %s13
    $region7: #{tpu_custom_call.1} parent=1 // loop_footer_branch
      %12 = sbr.rel target = $region3
    $region8: #{tpu_custom_call.1} parent=1 // loop_exit
      _
    %400 = vsyncpa [#allocation6], 1
    %s401 = scalar_lea.sflag [#allocation6], 1
    %402 = vsyncpa %s401, 1

</llo_original>
